<compile_context>
chip_gen: v5e
topology: v5e:2x2
jax: 0.10.0
libtpu: 0.0.40
codegen_flags: <defaults>
</compile_context>

<pallas_src>
import functools

import jax
import jax.numpy as jnp
from jax.experimental import pallas as pl
from jax.experimental.pallas import tpu as pltpu


# ----------------------------------------------------------------------------
# Fused kernel: one batch block per grid step.
#   refs = (w_0, b_0, w_1, b_1, ..., lin_w, lin_b, o)
#   x_ref : (Bt*L_pad, E) bf16     w_i : (k_i, E, C) bf16    b_i : (1, C) f32
#   lin_w : (F, O) bf16            lin_b: (1, O) f32          o   : (Bt, O) f32
# ----------------------------------------------------------------------------
def _cnn_fused_kernel(x_ref, *refs, ksizes, l_outs, offsets, bt, l_pad):
    n_branch = len(ksizes)
    conv_refs = refs[: 2 * n_branch]
    lin_w_ref = refs[2 * n_branch]
    lin_b_ref = refs[2 * n_branch + 1]
    o_ref = refs[2 * n_branch + 2]

    xv = x_ref[...]                                   # (Bt*L_pad, E) bf16
    rows = bt * l_pad

    branch_feats = []
    for i, k in enumerate(ksizes):                    # static branch loop
        w_ref = conv_refs[2 * i]                      # (k, E, C) bf16
        b_ref = conv_refs[2 * i + 1]                  # (1, C)    f32
        off, lo = offsets[i], l_outs[i]
        r_rows = rows - (k - 1)                       # valid accumulator rows

        # k-tap shift-and-accumulate conv: acc[r] = sum_dk X[r+dk] @ W[dk].
        # Rows near block-internal batch boundaries mix batches, but those
        # rows are never read by the per-batch max below.
        acc = None
        for dk in range(k):
            part = jnp.dot(xv[dk:dk + r_rows, :], w_ref[dk],
                           preferred_element_type=jnp.float32)
            acc = part if acc is None else acc + part
        acc = acc + b_ref[...]                        # bias
        acc = jnp.where(acc > 0, acc, 0.2 * acc)      # LeakyReLU(0.2)

        # Max over time per batch row; batch bi occupies accumulator rows
        # [bi*L_pad + off, bi*L_pad + off + lo)  (includes zero-padded
        # boundary positions, matching torch Conv1d(padding=k//2) + max).
        row_max = [jnp.max(acc[bi * l_pad + off: bi * l_pad + off + lo, :],
                           axis=0, keepdims=True) for bi in range(bt)]
        branch_feats.append(jnp.concatenate(row_max, axis=0) if bt > 1
                            else row_max[0])          # (Bt, C) f32

    feat = (jnp.concatenate(branch_feats, axis=-1)
            if n_branch > 1 else branch_feats[0])     # (Bt, F) f32

    # Linear + stabilized LogSoftmax (f32 except MXU inputs).
    z = jnp.dot(feat.astype(jnp.bfloat16), lin_w_ref[...],
                preferred_element_type=jnp.float32) + lin_b_ref[...]
    m = jnp.max(z, axis=-1, keepdims=True)
    s = z - m
    o_ref[...] = s - jnp.log(jnp.sum(jnp.exp(s), axis=-1, keepdims=True))


# ----------------------------------------------------------------------------
# Model wrapper (glue: embedding gather, single pad+flatten, param plumbing).
# ----------------------------------------------------------------------------
def cnn_forward(tokens, params):
    # TODO(synk): embedding gather is left to XLA (jnp.take); a Pallas DMA
    # gather is not worth it at these sizes.
    emb = jnp.take(params["embed"], tokens, axis=0)              # (B, L, E) f32
    B, L, E = emb.shape
    convs = params["convs"]
    ksizes = tuple(int(k) for (k, _, _) in convs)
    C = convs[0][1].shape[2]

    # Pad ONCE to the largest halo; per-branch offsets handled in-kernel.
    max_pad = max(ksizes) // 2
    L_pad = L + 2 * max_pad
    offsets = tuple(max_pad - k // 2 for k in ksizes)
    l_outs = tuple(L + 2 * (k // 2) - k + 1 for k in ksizes)     # torch Conv1d

    # Batch block; pad batch to a multiple of it so any B works.
    Bt = B if B <= 8 else 8
    B_pad = ((B + Bt - 1) // Bt) * Bt
    nb = B_pad // Bt

    x = jnp.pad(emb, ((0, B_pad - B), (max_pad, max_pad), (0, 0)))
    x_flat = x.reshape(B_pad * L_pad, E).astype(jnp.bfloat16)    # batch -> M

    F, O = params["lin_w"].shape
    lin_w = params["lin_w"].astype(jnp.bfloat16)
    lin_b = params["lin_b"].reshape(1, O).astype(jnp.float32)

    args = [x_flat]
    in_specs = [pl.BlockSpec((Bt * L_pad, E), lambda i: (i, 0))]
    for (k, w, b) in convs:
        args.append(w.astype(jnp.bfloat16))                      # (k, E, C)
        args.append(b.reshape(1, C).astype(jnp.float32))
        in_specs.append(pl.BlockSpec((k, E, C), lambda i: (0, 0, 0)))
        in_specs.append(pl.BlockSpec((1, C), lambda i: (0, 0)))
    args += [lin_w, lin_b]
    in_specs += [pl.BlockSpec((F, O), lambda i: (0, 0)),
                 pl.BlockSpec((1, O), lambda i: (0, 0))]

    kernel = functools.partial(_cnn_fused_kernel, ksizes=ksizes,
                               l_outs=l_outs, offsets=offsets, bt=Bt,
                               l_pad=L_pad)
    logit = pl.pallas_call(
        kernel,
        out_shape=jax.ShapeDtypeStruct((B_pad, O), jnp.float32),
        grid=(nb,),
        in_specs=in_specs,
        out_specs=pl.BlockSpec((Bt, O), lambda i: (i, 0)),
        compiler_params=pltpu.CompilerParams(
            dimension_semantics=("parallel",)),      # batch blocks independent
    )(*args)
    return logit[:B], 0


def init_params(key, vocab_size, embedding_dim, kernel_sizes, out_channels,
                n_classes=10):
    keys = jax.random.split(key, 3 + 2 * len(kernel_sizes))
    params = {
        "embed": 0.1 * jax.random.normal(
            keys[0], (vocab_size, embedding_dim), jnp.float32),
        "lin_w": 0.1 * jax.random.normal(
            keys[1], (out_channels * len(kernel_sizes), n_classes), jnp.float32),
        "lin_b": 0.1 * jax.random.normal(keys[2], (n_classes,), jnp.float32),
        "convs": [],
    }
    for i, k in enumerate(kernel_sizes):
        w = 0.1 * jax.random.normal(
            keys[3 + 2 * i], (k, embedding_dim, out_channels), jnp.float32)
        b = 0.1 * jax.random.normal(
            keys[4 + 2 * i], (out_channels,), jnp.float32)
        params["convs"].append((k, w, b))
    return params


# Pure-JAX f32 reference for correctness.
def ref_forward(tokens, params):
    emb = jnp.take(params["embed"], tokens, axis=0)
    res = []
    for (k, w, b) in params["convs"]:
        pad = k // 2
        xp = jnp.pad(emb, ((0, 0), (pad, pad), (0, 0)))
        l_out = xp.shape[1] - k + 1
        acc = jnp.zeros((emb.shape[0], l_out, w.shape[2]), jnp.float32) + b
        for dk in range(k):
            acc = acc + jnp.einsum("ble,ec->blc", xp[:, dk:dk + l_out, :], w[dk])
        acc = jnp.where(acc > 0, acc, 0.2 * acc)
        res.append(jnp.max(acc, axis=1))
    feat = jnp.concatenate(res, axis=1)
    z = feat @ params["lin_w"] + params["lin_b"]
    return jax.nn.log_softmax(z, axis=1)


if __name__ == "__main__":
    # Small, forward-consistent shapes.
    VOCAB, EMB, KS, C_OUT = 100, 32, (3, 5), 16
    B, L = 2, 16
    # TODO(synk): module's `dropout` arg is unused in its forward; nothing to port.

    key = jax.random.PRNGKey(0)
    k_tok, k_par = jax.random.split(key)
    tokens = jax.random.randint(k_tok, (B, L), 0, VOCAB, dtype=jnp.int32)
    params = init_params(k_par, VOCAB, EMB, KS, C_OUT)

    logit, zero = cnn_forward(tokens, params)
    logit = jax.block_until_ready(logit)

    ref = ref_forward(tokens, params)
    assert logit.shape == (B, 10) and zero == 0
    # bf16 MXU inputs (f32 accumulation) -> loosened tolerance vs f32 reference.
    assert jnp.allclose(logit, ref, atol=2e-2, rtol=2e-2), \
        float(jnp.max(jnp.abs(logit - ref)))
    print("KERNEL_OK")
</pallas_src>

<mosaic_0001>
module attributes {stable_mosaic.version = 11 : i64} {
  func.func @_cnn_fused_kernel(%arg0: i32, %arg1: memref<40x32xbf16, #tpu.memory_space<vmem>>, %arg2: memref<3x32x16xbf16, #tpu.memory_space<vmem>>, %arg3: memref<1x16xf32, #tpu.memory_space<vmem>>, %arg4: memref<5x32x16xbf16, #tpu.memory_space<vmem>>, %arg5: memref<1x16xf32, #tpu.memory_space<vmem>>, %arg6: memref<32x10xbf16, #tpu.memory_space<vmem>>, %arg7: memref<1x10xf32, #tpu.memory_space<vmem>>, %arg8: memref<2x10xf32, #tpu.memory_space<vmem>>) attributes {dimension_semantics = [#tpu.dimension_semantics<parallel>], iteration_bounds = array<i64: 1>, scalar_prefetch = 0 : i64, scratch_operands = 0 : i64, tpu.core_type = #tpu.core_type<tc>, window_params = [{transform_indices = @transform_0, window_bounds = array<i64: 40, 32>}, {pipeline_mode = #tpu.pipeline_mode<synchronous>, transform_indices = @transform_1, window_bounds = array<i64: 3, 32, 16>}, {pipeline_mode = #tpu.pipeline_mode<synchronous>, transform_indices = @transform_2, window_bounds = array<i64: 1, 16>}, {pipeline_mode = #tpu.pipeline_mode<synchronous>, transform_indices = @transform_3, window_bounds = array<i64: 5, 32, 16>}, {pipeline_mode = #tpu.pipeline_mode<synchronous>, transform_indices = @transform_4, window_bounds = array<i64: 1, 16>}, {pipeline_mode = #tpu.pipeline_mode<synchronous>, transform_indices = @transform_5, window_bounds = array<i64: 32, 10>}, {pipeline_mode = #tpu.pipeline_mode<synchronous>, transform_indices = @transform_6, window_bounds = array<i64: 1, 10>}, {transform_indices = @transform_7, window_bounds = array<i64: 2, 10>}]} {
    %c0 = arith.constant 0 : index
    %c0_0 = arith.constant 0 : index
    %0 = vector.load %arg1[%c0, %c0_0] : memref<40x32xbf16, #tpu.memory_space<vmem>>, vector<40x32xbf16>
    %1 = vector.extract_strided_slice %0 {offsets = [0, 0], sizes = [38, 32], strides = [1, 1]} : vector<40x32xbf16> to vector<38x32xbf16>
    %c0_1 = arith.constant 0 : index
    %c0_2 = arith.constant 0 : index
    %c0_3 = arith.constant 0 : index
    %2 = vector.load %arg2[%c0_1, %c0_2, %c0_3] : memref<3x32x16xbf16, #tpu.memory_space<vmem>>, vector<1x32x16xbf16>
    %3 = vector.shape_cast %2 : vector<1x32x16xbf16> to vector<32x16xbf16>
    %cst = arith.constant dense<0.000000e+00> : vector<38x16xf32>
    %4 = tpu.matmul %1, %3, %cst {dimension_numbers = #tpu.dot_dimension_numbers<[1], [0], [0], [1], [0, 0, 1, 1], [], []>} : vector<38x32xbf16>, vector<32x16xbf16>, vector<38x16xf32> -> vector<38x16xf32>
    %5 = vector.extract_strided_slice %0 {offsets = [1, 0], sizes = [38, 32], strides = [1, 1]} : vector<40x32xbf16> to vector<38x32xbf16>
    %c1 = arith.constant 1 : index
    %c0_4 = arith.constant 0 : index
    %c0_5 = arith.constant 0 : index
    %6 = vector.load %arg2[%c1, %c0_4, %c0_5] : memref<3x32x16xbf16, #tpu.memory_space<vmem>>, vector<1x32x16xbf16>
    %7 = vector.shape_cast %6 : vector<1x32x16xbf16> to vector<32x16xbf16>
    %cst_6 = arith.constant dense<0.000000e+00> : vector<38x16xf32>
    %8 = tpu.matmul %5, %7, %cst_6 {dimension_numbers = #tpu.dot_dimension_numbers<[1], [0], [0], [1], [0, 0, 1, 1], [], []>} : vector<38x32xbf16>, vector<32x16xbf16>, vector<38x16xf32> -> vector<38x16xf32>
    %9 = arith.addf %4, %8 : vector<38x16xf32>
    %10 = vector.extract_strided_slice %0 {offsets = [2, 0], sizes = [38, 32], strides = [1, 1]} : vector<40x32xbf16> to vector<38x32xbf16>
    %c2 = arith.constant 2 : index
    %c0_7 = arith.constant 0 : index
    %c0_8 = arith.constant 0 : index
    %11 = vector.load %arg2[%c2, %c0_7, %c0_8] : memref<3x32x16xbf16, #tpu.memory_space<vmem>>, vector<1x32x16xbf16>
    %12 = vector.shape_cast %11 : vector<1x32x16xbf16> to vector<32x16xbf16>
    %cst_9 = arith.constant dense<0.000000e+00> : vector<38x16xf32>
    %13 = tpu.matmul %10, %12, %cst_9 {dimension_numbers = #tpu.dot_dimension_numbers<[1], [0], [0], [1], [0, 0, 1, 1], [], []>} : vector<38x32xbf16>, vector<32x16xbf16>, vector<38x16xf32> -> vector<38x16xf32>
    %14 = arith.addf %9, %13 : vector<38x16xf32>
    %c0_10 = arith.constant 0 : index
    %c0_11 = arith.constant 0 : index
    %15 = vector.load %arg3[%c0_10, %c0_11] : memref<1x16xf32, #tpu.memory_space<vmem>>, vector<1x16xf32>
    %16 = vector.broadcast %15 : vector<1x16xf32> to vector<38x16xf32>
    %17 = arith.addf %14, %16 : vector<38x16xf32>
    %cst_12 = arith.constant 0.000000e+00 : f32
    %18 = vector.broadcast %cst_12 : f32 to vector<38x16xf32>
    %19 = arith.cmpf ogt, %17, %18 : vector<38x16xf32>
    %cst_13 = arith.constant 2.000000e-01 : f32
    %20 = vector.broadcast %cst_13 : f32 to vector<38x16xf32>
    %21 = arith.mulf %20, %17 : vector<38x16xf32>
    %22 = arith.select %19, %17, %21 : vector<38x16xi1>, vector<38x16xf32>
    %23 = vector.extract_strided_slice %22 {offsets = [1, 0], sizes = [16, 16], strides = [1, 1]} : vector<38x16xf32> to vector<16x16xf32>
    %cst_14 = arith.constant dense<0xFF800000> : vector<16xf32>
    %24 = vector.multi_reduction <maximumf>, %23, %cst_14 [0] : vector<16x16xf32> to vector<16xf32>
    %25 = vector.shape_cast %24 : vector<16xf32> to vector<1x16xf32>
    %26 = vector.extract_strided_slice %22 {offsets = [21, 0], sizes = [16, 16], strides = [1, 1]} : vector<38x16xf32> to vector<16x16xf32>
    %cst_15 = arith.constant dense<0xFF800000> : vector<16xf32>
    %27 = vector.multi_reduction <maximumf>, %26, %cst_15 [0] : vector<16x16xf32> to vector<16xf32>
    %28 = vector.shape_cast %27 : vector<16xf32> to vector<1x16xf32>
    %29 = tpu.concatenate %25, %28 in 0 : vector<1x16xf32>, vector<1x16xf32> -> vector<2x16xf32>
    %30 = vector.extract_strided_slice %0 {offsets = [0, 0], sizes = [36, 32], strides = [1, 1]} : vector<40x32xbf16> to vector<36x32xbf16>
    %c0_16 = arith.constant 0 : index
    %c0_17 = arith.constant 0 : index
    %c0_18 = arith.constant 0 : index
    %31 = vector.load %arg4[%c0_16, %c0_17, %c0_18] : memref<5x32x16xbf16, #tpu.memory_space<vmem>>, vector<1x32x16xbf16>
    %32 = vector.shape_cast %31 : vector<1x32x16xbf16> to vector<32x16xbf16>
    %cst_19 = arith.constant dense<0.000000e+00> : vector<36x16xf32>
    %33 = tpu.matmul %30, %32, %cst_19 {dimension_numbers = #tpu.dot_dimension_numbers<[1], [0], [0], [1], [0, 0, 1, 1], [], []>} : vector<36x32xbf16>, vector<32x16xbf16>, vector<36x16xf32> -> vector<36x16xf32>
    %34 = vector.extract_strided_slice %0 {offsets = [1, 0], sizes = [36, 32], strides = [1, 1]} : vector<40x32xbf16> to vector<36x32xbf16>
    %c1_20 = arith.constant 1 : index
    %c0_21 = arith.constant 0 : index
    %c0_22 = arith.constant 0 : index
    %35 = vector.load %arg4[%c1_20, %c0_21, %c0_22] : memref<5x32x16xbf16, #tpu.memory_space<vmem>>, vector<1x32x16xbf16>
    %36 = vector.shape_cast %35 : vector<1x32x16xbf16> to vector<32x16xbf16>
    %cst_23 = arith.constant dense<0.000000e+00> : vector<36x16xf32>
    %37 = tpu.matmul %34, %36, %cst_23 {dimension_numbers = #tpu.dot_dimension_numbers<[1], [0], [0], [1], [0, 0, 1, 1], [], []>} : vector<36x32xbf16>, vector<32x16xbf16>, vector<36x16xf32> -> vector<36x16xf32>
    %38 = arith.addf %33, %37 : vector<36x16xf32>
    %39 = vector.extract_strided_slice %0 {offsets = [2, 0], sizes = [36, 32], strides = [1, 1]} : vector<40x32xbf16> to vector<36x32xbf16>
    %c2_24 = arith.constant 2 : index
    %c0_25 = arith.constant 0 : index
    %c0_26 = arith.constant 0 : index
    %40 = vector.load %arg4[%c2_24, %c0_25, %c0_26] : memref<5x32x16xbf16, #tpu.memory_space<vmem>>, vector<1x32x16xbf16>
    %41 = vector.shape_cast %40 : vector<1x32x16xbf16> to vector<32x16xbf16>
    %cst_27 = arith.constant dense<0.000000e+00> : vector<36x16xf32>
    %42 = tpu.matmul %39, %41, %cst_27 {dimension_numbers = #tpu.dot_dimension_numbers<[1], [0], [0], [1], [0, 0, 1, 1], [], []>} : vector<36x32xbf16>, vector<32x16xbf16>, vector<36x16xf32> -> vector<36x16xf32>
    %43 = arith.addf %38, %42 : vector<36x16xf32>
    %44 = vector.extract_strided_slice %0 {offsets = [3, 0], sizes = [36, 32], strides = [1, 1]} : vector<40x32xbf16> to vector<36x32xbf16>
    %c3 = arith.constant 3 : index
    %c0_28 = arith.constant 0 : index
    %c0_29 = arith.constant 0 : index
    %45 = vector.load %arg4[%c3, %c0_28, %c0_29] : memref<5x32x16xbf16, #tpu.memory_space<vmem>>, vector<1x32x16xbf16>
    %46 = vector.shape_cast %45 : vector<1x32x16xbf16> to vector<32x16xbf16>
    %cst_30 = arith.constant dense<0.000000e+00> : vector<36x16xf32>
    %47 = tpu.matmul %44, %46, %cst_30 {dimension_numbers = #tpu.dot_dimension_numbers<[1], [0], [0], [1], [0, 0, 1, 1], [], []>} : vector<36x32xbf16>, vector<32x16xbf16>, vector<36x16xf32> -> vector<36x16xf32>
    %48 = arith.addf %43, %47 : vector<36x16xf32>
    %49 = vector.extract_strided_slice %0 {offsets = [4, 0], sizes = [36, 32], strides = [1, 1]} : vector<40x32xbf16> to vector<36x32xbf16>
    %c4 = arith.constant 4 : index
    %c0_31 = arith.constant 0 : index
    %c0_32 = arith.constant 0 : index
    %50 = vector.load %arg4[%c4, %c0_31, %c0_32] : memref<5x32x16xbf16, #tpu.memory_space<vmem>>, vector<1x32x16xbf16>
    %51 = vector.shape_cast %50 : vector<1x32x16xbf16> to vector<32x16xbf16>
    %cst_33 = arith.constant dense<0.000000e+00> : vector<36x16xf32>
    %52 = tpu.matmul %49, %51, %cst_33 {dimension_numbers = #tpu.dot_dimension_numbers<[1], [0], [0], [1], [0, 0, 1, 1], [], []>} : vector<36x32xbf16>, vector<32x16xbf16>, vector<36x16xf32> -> vector<36x16xf32>
    %53 = arith.addf %48, %52 : vector<36x16xf32>
    %c0_34 = arith.constant 0 : index
    %c0_35 = arith.constant 0 : index
    %54 = vector.load %arg5[%c0_34, %c0_35] : memref<1x16xf32, #tpu.memory_space<vmem>>, vector<1x16xf32>
    %55 = vector.broadcast %54 : vector<1x16xf32> to vector<36x16xf32>
    %56 = arith.addf %53, %55 : vector<36x16xf32>
    %cst_36 = arith.constant 0.000000e+00 : f32
    %57 = vector.broadcast %cst_36 : f32 to vector<36x16xf32>
    %58 = arith.cmpf ogt, %56, %57 : vector<36x16xf32>
    %cst_37 = arith.constant 2.000000e-01 : f32
    %59 = vector.broadcast %cst_37 : f32 to vector<36x16xf32>
    %60 = arith.mulf %59, %56 : vector<36x16xf32>
    %61 = arith.select %58, %56, %60 : vector<36x16xi1>, vector<36x16xf32>
    %62 = vector.extract_strided_slice %61 {offsets = [0, 0], sizes = [16, 16], strides = [1, 1]} : vector<36x16xf32> to vector<16x16xf32>
    %cst_38 = arith.constant dense<0xFF800000> : vector<16xf32>
    %63 = vector.multi_reduction <maximumf>, %62, %cst_38 [0] : vector<16x16xf32> to vector<16xf32>
    %64 = vector.shape_cast %63 : vector<16xf32> to vector<1x16xf32>
    %65 = vector.extract_strided_slice %61 {offsets = [20, 0], sizes = [16, 16], strides = [1, 1]} : vector<36x16xf32> to vector<16x16xf32>
    %cst_39 = arith.constant dense<0xFF800000> : vector<16xf32>
    %66 = vector.multi_reduction <maximumf>, %65, %cst_39 [0] : vector<16x16xf32> to vector<16xf32>
    %67 = vector.shape_cast %66 : vector<16xf32> to vector<1x16xf32>
    %68 = tpu.concatenate %64, %67 in 0 : vector<1x16xf32>, vector<1x16xf32> -> vector<2x16xf32>
    %69 = tpu.concatenate %29, %68 in 1 : vector<2x16xf32>, vector<2x16xf32> -> vector<2x32xf32>
    %70 = arith.truncf %69 : vector<2x32xf32> to vector<2x32xbf16>
    %c0_40 = arith.constant 0 : index
    %c0_41 = arith.constant 0 : index
    %71 = vector.load %arg6[%c0_40, %c0_41] : memref<32x10xbf16, #tpu.memory_space<vmem>>, vector<32x10xbf16>
    %cst_42 = arith.constant dense<0.000000e+00> : vector<2x10xf32>
    %72 = tpu.matmul %70, %71, %cst_42 {dimension_numbers = #tpu.dot_dimension_numbers<[1], [0], [0], [1], [0, 0, 1, 1], [], []>} : vector<2x32xbf16>, vector<32x10xbf16>, vector<2x10xf32> -> vector<2x10xf32>
    %c0_43 = arith.constant 0 : index
    %c0_44 = arith.constant 0 : index
    %73 = vector.load %arg7[%c0_43, %c0_44] : memref<1x10xf32, #tpu.memory_space<vmem>>, vector<1x10xf32>
    %74 = vector.broadcast %73 : vector<1x10xf32> to vector<2x10xf32>
    %75 = arith.addf %72, %74 : vector<2x10xf32>
    %cst_45 = arith.constant dense<0xFF800000> : vector<2xf32>
    %76 = vector.multi_reduction <maximumf>, %75, %cst_45 [1] : vector<2x10xf32> to vector<2xf32>
    %77 = vector.shape_cast %76 : vector<2xf32> to vector<2x1xf32>
    %78 = vector.broadcast %77 : vector<2x1xf32> to vector<2x10xf32>
    %79 = arith.subf %75, %78 : vector<2x10xf32>
    %80 = math.exp %79 : vector<2x10xf32>
    %cst_46 = arith.constant dense<0.000000e+00> : vector<2xf32>
    %81 = vector.multi_reduction <add>, %80, %cst_46 [1] : vector<2x10xf32> to vector<2xf32>
    %82 = vector.shape_cast %81 : vector<2xf32> to vector<2x1xf32>
    %83 = math.log %82 : vector<2x1xf32>
    %84 = vector.broadcast %83 : vector<2x1xf32> to vector<2x10xf32>
    %85 = arith.subf %79, %84 : vector<2x10xf32>
    %c0_47 = arith.constant 0 : index
    %c0_48 = arith.constant 0 : index
    %86 = vector.load %arg8[%c0_47, %c0_48] : memref<2x10xf32, #tpu.memory_space<vmem>>, vector<2x10xf32>
    tpu.vector_store %arg8[%c0_47, %c0_48], %85 {strides = array<i32>} : memref<2x10xf32, #tpu.memory_space<vmem>>, vector<2x10xf32>,
    return
  }
  func.func @transform_0(%arg0: i32) -> (i32, i32) {
    %c0_i32 = arith.constant 0 : i32
    %c0_i32_0 = arith.constant 0 : i32
    return %arg0, %c0_i32 : i32, i32
  }
  func.func @transform_1(%arg0: i32) -> (i32, i32, i32) {
    %c0_i32 = arith.constant 0 : i32
    %c0_i32_0 = arith.constant 0 : i32
    %c0_i32_1 = arith.constant 0 : i32
    %c0_i32_2 = arith.constant 0 : i32
    return %c0_i32, %c0_i32_0, %c0_i32_1 : i32, i32, i32
  }
  func.func @transform_2(%arg0: i32) -> (i32, i32) {
    %c0_i32 = arith.constant 0 : i32
    %c0_i32_0 = arith.constant 0 : i32
    %c0_i32_1 = arith.constant 0 : i32
    return %c0_i32, %c0_i32_0 : i32, i32
  }
  func.func @transform_3(%arg0: i32) -> (i32, i32, i32) {
    %c0_i32 = arith.constant 0 : i32
    %c0_i32_0 = arith.constant 0 : i32
    %c0_i32_1 = arith.constant 0 : i32
    %c0_i32_2 = arith.constant 0 : i32
    return %c0_i32, %c0_i32_0, %c0_i32_1 : i32, i32, i32
  }
  func.func @transform_4(%arg0: i32) -> (i32, i32) {
    %c0_i32 = arith.constant 0 : i32
    %c0_i32_0 = arith.constant 0 : i32
    %c0_i32_1 = arith.constant 0 : i32
    return %c0_i32, %c0_i32_0 : i32, i32
  }
  func.func @transform_5(%arg0: i32) -> (i32, i32) {
    %c0_i32 = arith.constant 0 : i32
    %c0_i32_0 = arith.constant 0 : i32
    %c0_i32_1 = arith.constant 0 : i32
    return %c0_i32, %c0_i32_0 : i32, i32
  }
  func.func @transform_6(%arg0: i32) -> (i32, i32) {
    %c0_i32 = arith.constant 0 : i32
    %c0_i32_0 = arith.constant 0 : i32
    %c0_i32_1 = arith.constant 0 : i32
    return %c0_i32, %c0_i32_0 : i32, i32
  }
  func.func @transform_7(%arg0: i32) -> (i32, i32) {
    %c0_i32 = arith.constant 0 : i32
    %c0_i32_0 = arith.constant 0 : i32
    return %arg0, %c0_i32 : i32, i32
  }
}

</mosaic_0001>

<llo_original>
// kernel: tpu_custom_call.1
$region0: #{tpu_custom_call.1}
  #allocation0 [shape = 'u32[]', space=smem, size = 0x4, offset = 0x4, fixed_abs, tag = 'smem constant byte address 0x4 - core index']
  #allocation1 [shape = 'u32[72,128]{1,0:T(1,128)}', space=vmem, size = 0x9000, scoped, tag = 'internal scratch']
  %s0 = inlined_call_operand.vmem [shape: bf16[40,32], index: 0, kind: input, shape index: {}]
  %s1 = inlined_call_operand.vmem [shape: bf16[3,32,16], index: 1, kind: input, shape index: {}]
  %s2 = inlined_call_operand.vmem [shape: f32[1,16], index: 2, kind: input, shape index: {}]
  %s3 = inlined_call_operand.vmem [shape: bf16[5,32,16], index: 3, kind: input, shape index: {}]
  %s4 = inlined_call_operand.vmem [shape: f32[1,16], index: 4, kind: input, shape index: {}]
  %s5 = inlined_call_operand.vmem [shape: bf16[32,10], index: 5, kind: input, shape index: {}]
  %s6 = inlined_call_operand.vmem [shape: f32[1,10], index: 6, kind: input, shape index: {}]
  %s7 = inlined_call_operand.hbm [shape: f32[2,10], index: 7, kind: output, shape index: {}]
  %s8 = sld [smem:[#allocation0]]
  $region38: #{tpu_custom_call.1} parent=0
    _
  %s10 = ssub.s32 1, %s8
  %s11 = scalar_select 0, %s10, %s8
  $region1: #{tpu_custom_call.1} parent=0
    #allocation2 [shape = 'u8[1024]{0}', space=vmem, size = 0x400, scoped, tag = 'output window, operand 0, single buffered']
    #allocation3 [shape = 's32[1]{0}', space=sflag, size = 0x4, scoped, tag = 'scoped memory for tpu_custom_call.1']
    %12 = vsyncpa [#allocation3], 0
    // Predicated region
    $region2: #{tpu_custom_call.1} parent=1 // pred_check
      _
    $region3: #{tpu_custom_call.1} parent=1 // pred_check_branch
      %14 = sbr.rel (0) target = $region5
    $region4: #{tpu_custom_call.1} parent=1 // pred_region
      _
    $region5: #{tpu_custom_call.1} parent=1 // pred_fallthru
      _
    // Predicated region
    $region6: #{tpu_custom_call.1} parent=1 // pred_check
      _
    $region7: #{tpu_custom_call.1} parent=1 // pred_check_branch
      %16 = sbr.rel (0) target = $region9
    $region8: #{tpu_custom_call.1} parent=1 // pred_region
      _
    $region9: #{tpu_custom_call.1} parent=1 // pred_fallthru
      _
    // Predicated region
    $region10: #{tpu_custom_call.1} parent=1 // pred_check
      _
    $region11: #{tpu_custom_call.1} parent=1 // pred_check_branch
      %18 = sbr.rel (0) target = $region13
    $region12: #{tpu_custom_call.1} parent=1 // pred_region
      _
    $region13: #{tpu_custom_call.1} parent=1 // pred_fallthru
      _
    // Predicated region
    $region14: #{tpu_custom_call.1} parent=1 // pred_check
      _
    $region15: #{tpu_custom_call.1} parent=1 // pred_check_branch
      %20 = sbr.rel (0) target = $region17
    $region16: #{tpu_custom_call.1} parent=1 // pred_region
      _
    $region17: #{tpu_custom_call.1} parent=1 // pred_fallthru
      _
    // Predicated region
    $region18: #{tpu_custom_call.1} parent=1 // pred_check
      _
    $region19: #{tpu_custom_call.1} parent=1 // pred_check_branch
      %22 = sbr.rel (0) target = $region21
    $region20: #{tpu_custom_call.1} parent=1 // pred_region
      _
    $region21: #{tpu_custom_call.1} parent=1 // pred_fallthru
      _
    // Predicated region
    $region22: #{tpu_custom_call.1} parent=1 // pred_check
      _
    $region23: #{tpu_custom_call.1} parent=1 // pred_check_branch
      %24 = sbr.rel (0) target = $region25
    $region24: #{tpu_custom_call.1} parent=1 // pred_region
      _
    $region25: #{tpu_custom_call.1} parent=1 // pred_fallthru
      _
    // Predicated region
    $region26: #{tpu_custom_call.1} parent=1 // pred_check
      _
    $region27: #{tpu_custom_call.1} parent=1 // pred_check_branch
      %26 = sbr.rel (0) target = $region29
    $region28: #{tpu_custom_call.1} parent=1 // pred_region
      _
    $region29: #{tpu_custom_call.1} parent=1 // pred_fallthru
      _
    %v28 = vld [vmem:[%s0] sm:$0xf]
    %v29 = vld [vmem:[%s0 + $0x4] sm:$0xf]
    %v30 = vld [vmem:[%s0 + $0x8] sm:$0xf]
    %v31 = vld [vmem:[%s0 + $0xc] sm:$0xf]
    %v32 = vld [vmem:[%s0 + $0x10] sm:$0xf]
    %v33 = vld [vmem:[%s1] sm:$0xf]
    %v34 = vld [vmem:[%s1 + $0x4] sm:$0xf]
    %v35 = vld [vmem:[%s1 + $0x8] sm:$0xf]
    %v36 = vld [vmem:[%s1 + $0xc] sm:$0xf]
    %s37 = scalar_lea.vmem %s1, 16
    %v38 = vld [vmem:[%s37] sm:$0xf]
    %v39 = vld [vmem:[%s37 + $0x4] sm:$0xf]
    %v40 = vld [vmem:[%s37 + $0x8] sm:$0xf]
    %v41 = vld [vmem:[%s37 + $0xc] sm:$0xf]
    %v47 = vunpack.c.l.b16 %v28
    %v48 = vunpack.c.l.b16 %v29
    %v49 = vunpack.c.l.b16 %v30
    %v50 = vunpack.c.l.b16 %v31
    %v51 = vunpack.c.l.b16 %v32
    %v52 = vpack.c.b16 %v48, %v47
    %v53 = vpack.c.b16 %v50, %v49
    %v54 = vpack.c.b16 %v51, %v51
    %vm55 = vsmask.f32 7424
    %v57 = vshrl.u32 %v52, 16
    %v59 = vshll.u32 %v52, 16
    %v61 = vrot.slane %v59, 1
    %v62 = vor.u32 %v57, %v61
    %v64 = vshll.u32 %v53, 16
    %v66 = vrot.slane %v64, 1
    %v67 = vsel %vm55, %v62, %v66
    %v68 = vshrl.u32 %v53, 16
    %v70 = vor.u32 %v68, %v66
    %v72 = vshll.u32 %v54, 16
    %v74 = vrot.slane %v72, 1
    %v75 = vsel %vm55, %v70, %v74
    %v76 = vshrl.u32 %v54, 16
    %v78 = vor.u32 %v76, %v74
    %v83 = vunpack.c.l.b16 %v38
    %v84 = vunpack.c.l.b16 %v39
    %v85 = vunpack.c.l.b16 %v40
    %v86 = vunpack.c.l.b16 %v41
    %v87 = vpack.c.b16 %v84, %v83
    %v88 = vpack.c.b16 %v86, %v85
    %vm91 = vcmask 261120
    %v93 = vsel %vm91, %v67, 0
    %v96 = vsel %vm91, %v75, 0
    %v99 = vsel %vm91, %v78, 0
    %101 = vmatpush.bf16.msra.mxu0 0
    %102 = vmatpush.bf16.msra.mxu0 0
    %103 = vmatpush.bf16.msra.mxu0 0
    %104 = vmatpush.bf16.msra.mxu0 0
    %105 = vmatpush.bf16.msra.mxu0 0
    %106 = vmatpush.bf16.msra.mxu0 0
    %107 = vmatpush.bf16.msra.mxu0 %v88
    %108 = vmatpush.bf16.msra.mxu0 %v87
    %109 = vmatmul.bf16.gmra.mxu0 %v93
    %v110 = vpop.f32.mrf.mxu0
    %v111 = vadd.f32 0.0, %v110
    %v112 = vpop.f32.mrf.mxu0
    %v113 = vadd.f32 0.0, %v112
    %114 = vmatmul.bf16.gmra.mxu0 %v96
    %v115 = vpop.f32.mrf.mxu0
    %v116 = vadd.f32 0.0, %v115
    %v117 = vpop.f32.mrf.mxu0
    %v118 = vadd.f32 0.0, %v117
    %119 = vmatmul.bf16.gmra.mxu0 %v99
    %v120 = vpop.f32.mrf.mxu0
    %v121 = vadd.f32 0.0, %v120
    %v122 = vpop.f32.mrf.mxu0
    %123 = vdwg.mxu0
    %v128 = vunpack.c.l.b16 %v33
    %v129 = vunpack.c.l.b16 %v34
    %v130 = vunpack.c.l.b16 %v35
    %v131 = vunpack.c.l.b16 %v36
    %v132 = vpack.c.b16 %v129, %v128
    %v133 = vpack.c.b16 %v131, %v130
    %v136 = vsel %vm91, %v52, 0
    %v138 = vsel %vm91, %v53, 0
    %v140 = vsel %vm91, %v54, 0
    %142 = vmatpush.bf16.msra.mxu0 0
    %143 = vmatpush.bf16.msra.mxu0 0
    %144 = vmatpush.bf16.msra.mxu0 0
    %145 = vmatpush.bf16.msra.mxu0 0
    %146 = vmatpush.bf16.msra.mxu0 0
    %147 = vmatpush.bf16.msra.mxu0 0
    %148 = vmatpush.bf16.msra.mxu0 %v133
    %149 = vmatpush.bf16.msra.mxu0 %v132
    %150 = vmatmul.bf16.gmra.mxu0 %v136
    %v151 = vpop.f32.mrf.mxu0
    %v152 = vadd.f32 %v111, %v151
    %v153 = vpop.f32.mrf.mxu0
    %v154 = vadd.f32 %v113, %v153
    %155 = vmatmul.bf16.gmra.mxu0 %v138
    %v156 = vpop.f32.mrf.mxu0
    %v157 = vadd.f32 %v116, %v156
    %v158 = vpop.f32.mrf.mxu0
    %v159 = vadd.f32 %v118, %v158
    %160 = vmatmul.bf16.gmra.mxu0 %v140
    %v161 = vpop.f32.mrf.mxu0
    %v162 = vadd.f32 %v121, %v161
    %v163 = vpop.f32.mrf.mxu0
    %164 = vdwg.mxu0
    %s165 = scalar_lea.vmem %s1, 32
    %v166 = vld [vmem:[%s165] sm:$0xf]
    %v167 = vld [vmem:[%s165 + $0x4] sm:$0xf]
    %v168 = vld [vmem:[%s165 + $0x8] sm:$0xf]
    %v169 = vld [vmem:[%s165 + $0xc] sm:$0xf]
    %vm170 = vcmask 1046528
    %v171 = vrot.slane %v52, 1
    %v172 = vrot.slane %v53, 1
    %v173 = vsel %vm170, %v171, %v172
    %v174 = vrot.slane %v54, 1
    %v175 = vsel %vm170, %v172, %v174
    %v180 = vunpack.c.l.b16 %v166
    %v181 = vunpack.c.l.b16 %v167
    %v182 = vunpack.c.l.b16 %v168
    %v183 = vunpack.c.l.b16 %v169
    %v184 = vpack.c.b16 %v181, %v180
    %v185 = vpack.c.b16 %v183, %v182
    %v189 = vsel %vm91, %v173, 0
    %v192 = vsel %vm91, %v175, 0
    %v195 = vsel %vm91, %v174, 0
    %197 = vmatpush.bf16.msra.mxu0 0
    %198 = vmatpush.bf16.msra.mxu0 0
    %199 = vmatpush.bf16.msra.mxu0 0
    %200 = vmatpush.bf16.msra.mxu0 0
    %201 = vmatpush.bf16.msra.mxu0 0
    %202 = vmatpush.bf16.msra.mxu0 0
    %203 = vmatpush.bf16.msra.mxu0 %v185
    %204 = vmatpush.bf16.msra.mxu0 %v184
    %205 = vmatmul.bf16.gmra.mxu0 %v189
    %v206 = vpop.f32.mrf.mxu0
    %v207 = vadd.f32 0.0, %v206
    %v208 = vpop.f32.mrf.mxu0
    %v209 = vadd.f32 0.0, %v208
    %210 = vmatmul.bf16.gmra.mxu0 %v192
    %v211 = vpop.f32.mrf.mxu0
    %v212 = vadd.f32 0.0, %v211
    %v213 = vpop.f32.mrf.mxu0
    %v214 = vadd.f32 0.0, %v213
    %215 = vmatmul.bf16.gmra.mxu0 %v195
    %v216 = vpop.f32.mrf.mxu0
    %v217 = vadd.f32 0.0, %v216
    %v218 = vpop.f32.mrf.mxu0
    %219 = vdwg.mxu0
    %v220 = vadd.f32 %v152, %v207
    %v221 = vadd.f32 %v154, %v209
    %v222 = vadd.f32 %v157, %v212
    %v223 = vadd.f32 %v159, %v214
    %v224 = vadd.f32 %v162, %v217
    %v225 = vld [vmem:[%s2] sm:$0x1]
    %v227 = vperm.slane %v225, 0
    %v229 = vadd.f32 %v220, %v227
    %v230 = vadd.f32 %v221, %v227
    %v231 = vadd.f32 %v222, %v227
    %v232 = vadd.f32 %v223, %v227
    %v233 = vadd.f32 %v224, %v227
    %vm234 = vcmp.gt.f32.partialorder %v229, 0.0
    %vm235 = vcmp.gt.f32.partialorder %v230, 0.0
    %vm236 = vcmp.gt.f32.partialorder %v231, 0.0
    %vm237 = vcmp.gt.f32.partialorder %v232, 0.0
    %vm238 = vcmp.gt.f32.partialorder %v233, 0.0
    %v239 = vmul.f32 %v229, 0.2
    %v240 = vmul.f32 %v230, 0.2
    %v241 = vmul.f32 %v231, 0.2
    %v242 = vmul.f32 %v232, 0.2
    %v243 = vmul.f32 %v233, 0.2
    %v244 = vsel %vm234, %v229, %v239
    %v245 = vsel %vm235, %v230, %v240
    %v246 = vsel %vm236, %v231, %v241
    %v247 = vsel %vm237, %v232, %v242
    %v248 = vsel %vm238, %v233, %v243
    %vm249 = vcmask 130049
    %v250 = vsel %vm249, %v244, -inf
    %vm251 = vcmask 130048
    %v252 = vsel %vm251, %v245, -inf
    %vm253 = vcmask 122880
    %v254 = vsel %vm253, %v246, -inf
    %v255 = vmax.f32 %v250, %v252
    %v256 = vmax.f32 %v255, %v254
    %v257 = vrot.slane %v256, 4
    %v258 = vmax.f32 %v256, %v257
    %v259 = vrot.slane %v258, 2
    %v260 = vmax.f32 %v258, %v259
    %v261 = vrot.slane %v260, 1
    %v262 = vmax.f32 %v260, %v261
    %vm263 = vcmask 130053
    %v264 = vsel %vm263, %v246, -inf
    %v265 = vsel %vm251, %v247, -inf
    %vm266 = vcmask 126976
    %v267 = vsel %vm266, %v248, -inf
    %v268 = vmax.f32 %v264, %v265
    %v269 = vmax.f32 %v268, %v267
    %v270 = vrot.slane %v269, 4
    %v271 = vmax.f32 %v269, %v270
    %v272 = vrot.slane %v271, 2
    %v273 = vmax.f32 %v271, %v272
    %v274 = vrot.slane %v273, 1
    %v275 = vmax.f32 %v273, %v274
    %vm276 = vcmask 1040384
    %v277 = vsel %vm276, %v262, %v275
    %v278 = vld [vmem:[%s3] sm:$0xf]
    %v279 = vld [vmem:[%s3 + $0x4] sm:$0xf]
    %v280 = vld [vmem:[%s3 + $0x8] sm:$0xf]
    %v281 = vld [vmem:[%s3 + $0xc] sm:$0xf]
    %s282 = scalar_lea.vmem %s3, 16
    %v283 = vld [vmem:[%s282] sm:$0xf]
    %v284 = vld [vmem:[%s282 + $0x4] sm:$0xf]
    %v285 = vld [vmem:[%s282 + $0x8] sm:$0xf]
    %v286 = vld [vmem:[%s282 + $0xc] sm:$0xf]
    %v291 = vunpack.c.l.b16 %v283
    %v292 = vunpack.c.l.b16 %v284
    %v293 = vunpack.c.l.b16 %v285
    %v294 = vunpack.c.l.b16 %v286
    %v295 = vpack.c.b16 %v292, %v291
    %v296 = vpack.c.b16 %v294, %v293
    %299 = vmatpush.bf16.msra.mxu0 0
    %300 = vmatpush.bf16.msra.mxu0 0
    %301 = vmatpush.bf16.msra.mxu0 0
    %302 = vmatpush.bf16.msra.mxu0 0
    %303 = vmatpush.bf16.msra.mxu0 0
    %304 = vmatpush.bf16.msra.mxu0 0
    %305 = vmatpush.bf16.msra.mxu0 %v296
    %306 = vmatpush.bf16.msra.mxu0 %v295
    %307 = vmatmul.bf16.gmra.mxu0 %v93
    %v308 = vpop.f32.mrf.mxu0
    %v309 = vadd.f32 0.0, %v308
    %v310 = vpop.f32.mrf.mxu0
    %v311 = vadd.f32 0.0, %v310
    %312 = vmatmul.bf16.gmra.mxu0 %v96
    %v313 = vpop.f32.mrf.mxu0
    %v314 = vadd.f32 0.0, %v313
    %v315 = vpop.f32.mrf.mxu0
    %v316 = vadd.f32 0.0, %v315
    %317 = vmatmul.bf16.gmra.mxu0 %v99
    %v318 = vpop.f32.mrf.mxu0
    %v319 = vadd.f32 0.0, %v318
    %v320 = vpop.f32.mrf.mxu0
    %321 = vdwg.mxu0
    %v326 = vunpack.c.l.b16 %v278
    %v327 = vunpack.c.l.b16 %v279
    %v328 = vunpack.c.l.b16 %v280
    %v329 = vunpack.c.l.b16 %v281
    %v330 = vpack.c.b16 %v327, %v326
    %v331 = vpack.c.b16 %v329, %v328
    %334 = vmatpush.bf16.msra.mxu0 0
    %335 = vmatpush.bf16.msra.mxu0 0
    %336 = vmatpush.bf16.msra.mxu0 0
    %337 = vmatpush.bf16.msra.mxu0 0
    %338 = vmatpush.bf16.msra.mxu0 0
    %339 = vmatpush.bf16.msra.mxu0 0
    %340 = vmatpush.bf16.msra.mxu0 %v331
    %341 = vmatpush.bf16.msra.mxu0 %v330
    %342 = vmatmul.bf16.gmra.mxu0 %v136
    %v343 = vpop.f32.mrf.mxu0
    %v344 = vadd.f32 %v309, %v343
    %v345 = vpop.f32.mrf.mxu0
    %v346 = vadd.f32 %v311, %v345
    %347 = vmatmul.bf16.gmra.mxu0 %v138
    %v348 = vpop.f32.mrf.mxu0
    %v349 = vadd.f32 %v314, %v348
    %v350 = vpop.f32.mrf.mxu0
    %v351 = vadd.f32 %v316, %v350
    %352 = vmatmul.bf16.gmra.mxu0 %v140
    %v353 = vpop.f32.mrf.mxu0
    %v354 = vadd.f32 %v319, %v353
    %v355 = vpop.f32.mrf.mxu0
    %356 = vdwg.mxu0
    %s357 = scalar_lea.vmem %s3, 32
    %v358 = vld [vmem:[%s357] sm:$0xf]
    %v359 = vld [vmem:[%s357 + $0x4] sm:$0xf]
    %v360 = vld [vmem:[%s357 + $0x8] sm:$0xf]
    %v361 = vld [vmem:[%s357 + $0xc] sm:$0xf]
    %v366 = vunpack.c.l.b16 %v358
    %v367 = vunpack.c.l.b16 %v359
    %v368 = vunpack.c.l.b16 %v360
    %v369 = vunpack.c.l.b16 %v361
    %v370 = vpack.c.b16 %v367, %v366
    %v371 = vpack.c.b16 %v369, %v368
    %374 = vmatpush.bf16.msra.mxu0 0
    %375 = vmatpush.bf16.msra.mxu0 0
    %376 = vmatpush.bf16.msra.mxu0 0
    %377 = vmatpush.bf16.msra.mxu0 0
    %378 = vmatpush.bf16.msra.mxu0 0
    %379 = vmatpush.bf16.msra.mxu0 0
    %380 = vmatpush.bf16.msra.mxu0 %v371
    %381 = vmatpush.bf16.msra.mxu0 %v370
    %382 = vmatmul.bf16.gmra.mxu0 %v189
    %v383 = vpop.f32.mrf.mxu0
    %v384 = vadd.f32 0.0, %v383
    %v385 = vpop.f32.mrf.mxu0
    %v386 = vadd.f32 0.0, %v385
    %387 = vmatmul.bf16.gmra.mxu0 %v192
    %v388 = vpop.f32.mrf.mxu0
    %v389 = vadd.f32 0.0, %v388
    %v390 = vpop.f32.mrf.mxu0
    %v391 = vadd.f32 0.0, %v390
    %392 = vmatmul.bf16.gmra.mxu0 %v195
    %v393 = vpop.f32.mrf.mxu0
    %v394 = vadd.f32 0.0, %v393
    %v395 = vpop.f32.mrf.mxu0
    %396 = vdwg.mxu0
    %v397 = vadd.f32 %v344, %v384
    %v398 = vadd.f32 %v346, %v386
    %v399 = vadd.f32 %v349, %v389
    %v400 = vadd.f32 %v351, %v391
    %v401 = vadd.f32 %v354, %v394
    %s402 = scalar_lea.vmem %s3, 48
    %v403 = vld [vmem:[%s402] sm:$0xf]
    %v404 = vld [vmem:[%s402 + $0x4] sm:$0xf]
    %v405 = vld [vmem:[%s402 + $0x8] sm:$0xf]
    %v406 = vld [vmem:[%s402 + $0xc] sm:$0xf]
    %vm407 = vsmask.f32 6400
    %v408 = vrot.slane %v57, 1
    %v409 = vrot.slane %v59, 2
    %v410 = vor.u32 %v408, %v409
    %v411 = vrot.slane %v68, 1
    %v412 = vrot.slane %v64, 2
    %v413 = vor.u32 %v411, %v412
    %v414 = vsel %vm407, %v410, %v413
    %v415 = vrot.slane %v76, 1
    %v416 = vrot.slane %v72, 2
    %v417 = vor.u32 %v415, %v416
    %v418 = vsel %vm407, %v413, %v417
    %v423 = vunpack.c.l.b16 %v403
    %v424 = vunpack.c.l.b16 %v404
    %v425 = vunpack.c.l.b16 %v405
    %v426 = vunpack.c.l.b16 %v406
    %v427 = vpack.c.b16 %v424, %v423
    %v428 = vpack.c.b16 %v426, %v425
    %v432 = vsel %vm91, %v414, 0
    %v435 = vsel %vm91, %v418, 0
    %v438 = vsel %vm91, %v417, 0
    %440 = vmatpush.bf16.msra.mxu0 0
    %441 = vmatpush.bf16.msra.mxu0 0
    %442 = vmatpush.bf16.msra.mxu0 0
    %443 = vmatpush.bf16.msra.mxu0 0
    %444 = vmatpush.bf16.msra.mxu0 0
    %445 = vmatpush.bf16.msra.mxu0 0
    %446 = vmatpush.bf16.msra.mxu0 %v428
    %447 = vmatpush.bf16.msra.mxu0 %v427
    %448 = vmatmul.bf16.gmra.mxu0 %v432
    %v449 = vpop.f32.mrf.mxu0
    %v450 = vadd.f32 0.0, %v449
    %v451 = vpop.f32.mrf.mxu0
    %v452 = vadd.f32 0.0, %v451
    %453 = vmatmul.bf16.gmra.mxu0 %v435
    %v454 = vpop.f32.mrf.mxu0
    %v455 = vadd.f32 0.0, %v454
    %v456 = vpop.f32.mrf.mxu0
    %v457 = vadd.f32 0.0, %v456
    %458 = vmatmul.bf16.gmra.mxu0 %v438
    %v459 = vpop.f32.mrf.mxu0
    %v460 = vadd.f32 0.0, %v459
    %v461 = vpop.f32.mrf.mxu0
    %462 = vdwg.mxu0
    %v463 = vadd.f32 %v397, %v450
    %v464 = vadd.f32 %v398, %v452
    %v465 = vadd.f32 %v399, %v455
    %v466 = vadd.f32 %v400, %v457
    %v467 = vadd.f32 %v401, %v460
    %s468 = scalar_lea.vmem %s3, 64
    %v469 = vld [vmem:[%s468] sm:$0xf]
    %v470 = vld [vmem:[%s468 + $0x4] sm:$0xf]
    %v471 = vld [vmem:[%s468 + $0x8] sm:$0xf]
    %v472 = vld [vmem:[%s468 + $0xc] sm:$0xf]
    %vm473 = vcmask 1045504
    %v474 = vrot.slane %v52, 2
    %v475 = vrot.slane %v53, 2
    %v476 = vsel %vm473, %v474, %v475
    %v477 = vrot.slane %v54, 2
    %v478 = vsel %vm473, %v475, %v477
    %v483 = vunpack.c.l.b16 %v469
    %v484 = vunpack.c.l.b16 %v470
    %v485 = vunpack.c.l.b16 %v471
    %v486 = vunpack.c.l.b16 %v472
    %v487 = vpack.c.b16 %v484, %v483
    %v488 = vpack.c.b16 %v486, %v485
    %v492 = vsel %vm91, %v476, 0
    %v495 = vsel %vm91, %v478, 0
    %v498 = vsel %vm91, %v477, 0
    %500 = vmatpush.bf16.msra.mxu0 0
    %501 = vmatpush.bf16.msra.mxu0 0
    %502 = vmatpush.bf16.msra.mxu0 0
    %503 = vmatpush.bf16.msra.mxu0 0
    %504 = vmatpush.bf16.msra.mxu0 0
    %505 = vmatpush.bf16.msra.mxu0 0
    %506 = vmatpush.bf16.msra.mxu0 %v488
    %507 = vmatpush.bf16.msra.mxu0 %v487
    %508 = vmatmul.bf16.gmra.mxu0 %v492
    %v509 = vpop.f32.mrf.mxu0
    %v510 = vadd.f32 0.0, %v509
    %v511 = vpop.f32.mrf.mxu0
    %v512 = vadd.f32 0.0, %v511
    %513 = vmatmul.bf16.gmra.mxu0 %v495
    %v514 = vpop.f32.mrf.mxu0
    %v515 = vadd.f32 0.0, %v514
    %v516 = vpop.f32.mrf.mxu0
    %v517 = vadd.f32 0.0, %v516
    %518 = vmatmul.bf16.gmra.mxu0 %v498
    %v519 = vpop.f32.mrf.mxu0
    %v520 = vadd.f32 0.0, %v519
    %v521 = vpop.f32.mrf.mxu0
    %522 = vdwg.mxu0
    %v523 = vadd.f32 %v463, %v510
    %v524 = vadd.f32 %v464, %v512
    %v525 = vadd.f32 %v465, %v515
    %v526 = vadd.f32 %v466, %v517
    %v527 = vadd.f32 %v467, %v520
    %v528 = vld [vmem:[%s4] sm:$0x1]
    %v530 = vperm.slane %v528, 0
    %v532 = vadd.f32 %v523, %v530
    %v533 = vadd.f32 %v524, %v530
    %v534 = vadd.f32 %v525, %v530
    %v535 = vadd.f32 %v526, %v530
    %v536 = vadd.f32 %v527, %v530
    %vm537 = vcmp.gt.f32.partialorder %v532, 0.0
    %vm538 = vcmp.gt.f32.partialorder %v533, 0.0
    %vm539 = vcmp.gt.f32.partialorder %v534, 0.0
    %vm540 = vcmp.gt.f32.partialorder %v535, 0.0
    %vm541 = vcmp.gt.f32.partialorder %v536, 0.0
    %v542 = vmul.f32 %v532, 0.2
    %v543 = vmul.f32 %v533, 0.2
    %v544 = vmul.f32 %v534, 0.2
    %v545 = vmul.f32 %v535, 0.2
    %v546 = vmul.f32 %v536, 0.2
    %v547 = vsel %vm537, %v532, %v542
    %v548 = vsel %vm538, %v533, %v543
    %v549 = vsel %vm539, %v534, %v544
    %v550 = vsel %vm540, %v535, %v545
    %v551 = vsel %vm541, %v536, %v546
    %v552 = vsel %vm251, %v547, -inf
    %v553 = vsel %vm251, %v548, -inf
    %v554 = vmax.f32 %v552, %v553
    %v555 = vrot.slane %v554, 4
    %v556 = vmax.f32 %v554, %v555
    %v557 = vrot.slane %v556, 2
    %v558 = vmax.f32 %v556, %v557
    %v559 = vrot.slane %v558, 1
    %v560 = vmax.f32 %v558, %v559
    %vm561 = vcmask 130052
    %v562 = vsel %vm561, %v549, -inf
    %v563 = vsel %vm251, %v550, -inf
    %vm564 = vcmask 125952
    %v565 = vsel %vm564, %v551, -inf
    %v566 = vmax.f32 %v562, %v563
    %v567 = vmax.f32 %v566, %v565
    %v568 = vrot.slane %v567, 4
    %v569 = vmax.f32 %v567, %v568
    %v570 = vrot.slane %v569, 2
    %v571 = vmax.f32 %v569, %v570
    %v572 = vrot.slane %v571, 1
    %v573 = vmax.f32 %v571, %v572
    %v574 = vsel %vm276, %v560, %v573
    %576 = vrot.lane.b32.xlu0 %v574, 16
    %v577 = vpop.permute.xlu0 %576
    %v579 = vsel %vm251, %v277, %v577
    %v580 = vpack.c.bf16 %v579, %v579
    %v581 = vld [vmem:[%s5] sm:$0xf]
    %v582 = vld [vmem:[%s5 + $0x4] sm:$0xf]
    %v583 = vld [vmem:[%s5 + $0x8] sm:$0xf]
    %v584 = vld [vmem:[%s5 + $0xc] sm:$0xf]
    %v585 = vld [vmem:[%s6] sm:$0x1]
    %v587 = vperm.slane %v585, 0
    %v593 = vunpack.c.l.b16 %v581
    %v594 = vunpack.c.l.b16 %v582
    %v595 = vunpack.c.l.b16 %v583
    %v596 = vunpack.c.l.b16 %v584
    %v597 = vpack.c.b16 %v594, %v593
    %v598 = vpack.c.b16 %v596, %v595
    %v602 = vsel %vm91, %v580, 0
    %604 = vmatpush.bf16.msra.mxu0 0
    %605 = vmatpush.bf16.msra.mxu0 0
    %606 = vmatpush.bf16.msra.mxu0 0
    %607 = vmatpush.bf16.msra.mxu0 0
    %608 = vmatpush.bf16.msra.mxu0 0
    %609 = vmatpush.bf16.msra.mxu0 0
    %610 = vmatpush.bf16.msra.mxu0 %v598
    %611 = vmatpush.bf16.msra.mxu0 %v597
    %612 = vmatmul.bf16.gmra.mxu0 %v602
    %v613 = vpop.f32.mrf.mxu0
    %v614 = vadd.f32 %v587, %v613
    %v615 = vpop.f32.mrf.mxu0
    %616 = vdwg.mxu0
    %vm617 = vcmask 74752
    %v618 = vsel %vm617, %v614, -inf
    %619 = vmax.xlane.f32.xlu0 %v618
    %v620 = vpop.xlane.xlu0 %619
    %v621 = vsub.f32 %v614, %v620
    %v622 = vmul.f32 %v621, 1.442695
    %v623 = vpow.pop %v622
    %v624 = vsel %vm617, %v623, 0.0
    %625 = vadd.xlane.f32.xlu0 %v624
    %v626 = vpop.xlane.xlu0 %625
    %v627 = vlog2.pop %v626
    %v628 = vmul.f32 %v627, 0.6931472
    %v629 = vsub.f32 %v621, %v628
    %630 = vst.msk [vmem:[#allocation2] sm:$0x3] %vm617, %v629
    // Predicated region
    $region30: #{tpu_custom_call.1} parent=1 // pred_check
      _
    $region31: #{tpu_custom_call.1} parent=1 // pred_check_branch
      %632 = sbr.rel (0) target = $region33
    $region32: #{tpu_custom_call.1} parent=1 // pred_region
      %634 = vsyncadd [#allocation3], 0
      %s636 = sshll.u32 [#allocation2], 4
      %s637 = int_to_ptr.vmem [resolvable:$true] %s636
      %s638 = sshll.u32 %s7, 4
      %s639 = int_to_ptr.hbm [resolvable:$true] %s638
      %641 = dma.vmem_to_hbm [thread:$0]  %s637, 32, %s639, [#allocation3]
    $region33: #{tpu_custom_call.1} parent=1 // pred_fallthru
      _
    // Predicated region
    $region34: #{tpu_custom_call.1} parent=1 // pred_check
      _
    $region35: #{tpu_custom_call.1} parent=1 // pred_check_branch
      %643 = sbr.rel (0) target = $region37
    $region36: #{tpu_custom_call.1} parent=1 // pred_region
      %645 = dma.done [#allocation3], 32
    $region37: #{tpu_custom_call.1} parent=1 // pred_fallthru
      _
    %646 = vsyncpa [#allocation3], 1

</llo_original>
